<compile_context>
chip_gen: v5e
topology: v5e:2x2
jax: 0.10.0
libtpu: 0.0.40
codegen_flags: <defaults>
</compile_context>

<pallas_src>
import numpy as np
import jax
import jax.numpy as jnp
from jax.experimental import pallas as pl
from jax.experimental.pallas import tpu as pltpu


# ---------------------------------------------------------------------------
# 1-D bilinear (align_corners=True) interpolation matrix, matching
# torch.nn.UpsamplingBilinear2d(scale_factor=2).
# ---------------------------------------------------------------------------
def bilinear_upsample_matrix(n_in: int, n_out: int) -> np.ndarray:
    i = np.arange(n_out)
    if n_out == 1 or n_in == 1:
        src = np.zeros(n_out, dtype=np.float64)
    else:
        src = i * (n_in - 1) / (n_out - 1)
    lo = np.clip(np.floor(src).astype(np.int64), 0, n_in - 1)
    hi = np.minimum(lo + 1, n_in - 1)
    frac = (src - lo).astype(np.float32)
    U = np.zeros((n_out, n_in), dtype=np.float32)
    U[i, lo] += (1.0 - frac)
    U[i, hi] += frac
    return U


# ---------------------------------------------------------------------------
# Pallas kernel: one batch element per grid step.
#   xqk_ref : (2C, H*W)   bf16   [query ; strided-subsampled key], channels-first
#   v_ref   : (C, Ho, Wo) f32    value, natural NCHW block
#   wqk_ref : (C, 2C)     bf16   fused [Wq | Wk]
#   bqk_ref : (C, 1)      f32    bq + bk
#   wa_ref  : (C, 1)      f32    attention conv weight (column)
#   ba_ref  : (1, 1)      f32    attention conv bias
#   a_ref   : (Ho, H*W)   f32    A[ho, h*W+w] = Uh[ho, h]
#   b_ref   : (H*W, Wo)   f32    B[h*W+w, wo] = Uw[wo, w]
#   o_ref   : (C, Ho, Wo)        output block
# ---------------------------------------------------------------------------
def _attn_res_kernel(xqk_ref, v_ref, wqk_ref, bqk_ref, wa_ref, ba_ref,
                     a_ref, b_ref, o_ref):
    # fused query+key 1x1 convs: one MXU matmul, bf16 operands, f32 accumulate
    qk = jnp.dot(wqk_ref[...], xqk_ref[...],
                 preferred_element_type=jnp.float32)               # (C, HW)
    combined = jnp.maximum(qk + bqk_ref[...], 0.0)                 # ReLU (VPU)

    # attention 1x1 conv (C -> 1): VPU multiply + sublane reduce (off the MXU)
    logits = jnp.sum(combined * wa_ref[...], axis=0, keepdims=True) + ba_ref[...]
    att = jax.nn.sigmoid(logits)                                   # (1, HW) EUP

    # bilinear upsample (align_corners=True), flat->2D reshape folded into A/B:
    #   att_up[ho, wo] = sum_p A[ho, p] * att[p] * B[p, wo]
    att_up = jnp.dot(a_ref[...] * att, b_ref[...],
                     preferred_element_type=jnp.float32)           # (Ho, Wo)

    # broadcast over channels (leading dim) and gate the value tensor
    o_ref[...] = (v_ref[...] * att_up[None, :, :]).astype(o_ref.dtype)


# ---------------------------------------------------------------------------
# Wrapper: NCHW in / NCHW out, mirroring the PyTorch module interface.
# params = (wq (C,C), bq (C,), wk (C,C), bk (C,), wa (1,C), ba (1,))
# ---------------------------------------------------------------------------
def attention_res_block(query, key, value, params):
    wq, bq, wk, bk, wa, ba = params
    N, C, H, W = query.shape
    _, _, Ho, Wo = value.shape
    # TODO(synk): stride-2 path assumes even encoder resolution (Ho=2H, Wo=2W).
    assert Ho == 2 * H and Wo == 2 * W, "expects scale-factor-2 geometry"
    HW = H * W

    # stride-2 1x1 conv on `key` == spatial subsample then 1x1 conv
    key_ds = key[:, :, ::2, ::2]                                   # (N, C, H, W)

    # channels-first flat layout: pure reshapes in HBM, no transposes.
    q_flat = query.reshape(N, C, HW)
    k_flat = key_ds.reshape(N, C, HW)

    # fuse the two 1x1 convs into one deeper-K matmul; bf16 operands for MXU.
    xqk = jnp.concatenate([q_flat, k_flat], axis=1).astype(jnp.bfloat16)  # (N,2C,HW)
    wqk = jnp.concatenate([wq, wk], axis=1).astype(jnp.bfloat16)          # (C, 2C)
    bqk = (bq + bk).reshape(C, 1).astype(jnp.float32)
    wa_col = wa.reshape(C, 1).astype(jnp.float32)
    ba2 = ba.reshape(1, 1).astype(jnp.float32)

    # Separable bilinear upsample expressed directly on the flat attention map
    # (O(S^3) bytes instead of the O(S^4) Kronecker matrix).
    Uh = bilinear_upsample_matrix(H, Ho)                    # (Ho, H)
    Uw = bilinear_upsample_matrix(W, Wo)                    # (Wo, W)
    A = jnp.asarray(np.repeat(Uh, W, axis=1), jnp.float32)  # (Ho, HW): A[ho,hW+w]=Uh[ho,h]
    B = jnp.asarray(np.tile(Uw.T, (H, 1)), jnp.float32)     # (HW, Wo): B[hW+w,wo]=Uw[wo,w]

    out = pl.pallas_call(
        _attn_res_kernel,
        out_shape=jax.ShapeDtypeStruct((N, C, Ho, Wo), value.dtype),
        grid=(N,),
        in_specs=[
            pl.BlockSpec((None, 2 * C, HW), lambda n: (n, 0, 0)),     # xqk
            pl.BlockSpec((None, C, Ho, Wo), lambda n: (n, 0, 0, 0)),  # value (NCHW)
            pl.BlockSpec((C, 2 * C), lambda n: (0, 0)),               # fused weight
            pl.BlockSpec((C, 1), lambda n: (0, 0)),                   # fused bias
            pl.BlockSpec((C, 1), lambda n: (0, 0)),                   # attention weight
            pl.BlockSpec((1, 1), lambda n: (0, 0)),                   # attention bias
            pl.BlockSpec((Ho, HW), lambda n: (0, 0)),                 # upsample A
            pl.BlockSpec((HW, Wo), lambda n: (0, 0)),                 # upsample B
        ],
        out_specs=pl.BlockSpec((None, C, Ho, Wo), lambda n: (n, 0, 0, 0)),
        compiler_params=pltpu.CompilerParams(
            dimension_semantics=("parallel",),
            vmem_limit_bytes=32 * 1024 * 1024),
    )(xqk, value, wqk, bqk, wa_col, ba2, A, B)
    return out


# ---------------------------------------------------------------------------
# Pure-JAX NCHW f32 reference (faithful to the PyTorch module).
# ---------------------------------------------------------------------------
def reference(query, key, value, params):
    wq, bq, wk, bk, wa, ba = params
    N, C, H, W = query.shape
    _, _, Ho, Wo = value.shape
    q = jnp.einsum('oi,nihw->nohw', wq, query) + bq[None, :, None, None]
    key_ds = key[:, :, ::2, ::2]
    k = jnp.einsum('oi,nihw->nohw', wk, key_ds) + bk[None, :, None, None]
    combined = jnp.maximum(q + k, 0.0)
    att = jax.nn.sigmoid(jnp.einsum('oi,nihw->nohw', wa, combined)
                         + ba[None, :, None, None])                 # (N,1,H,W)
    Uh = jnp.asarray(bilinear_upsample_matrix(H, Ho))
    Uw = jnp.asarray(bilinear_upsample_matrix(W, Wo))
    att_up = jnp.einsum('ph,nchw,qw->ncpq', Uh, att, Uw)            # (N,1,Ho,Wo)
    return value * att_up


if __name__ == "__main__":
    N, C = 2, 8
    H, W = 16, 16          # query spatial (decoder side)
    Ho, Wo = 32, 32        # key / value spatial (encoder side, 2x)

    root = jax.random.PRNGKey(0)
    kq, kk, kv, k1, k2, k3, k4, k5, k6 = jax.random.split(root, 9)

    query = jax.random.normal(kq, (N, C, H, W), jnp.float32)
    key = jax.random.normal(kk, (N, C, Ho, Wo), jnp.float32)
    value = jax.random.normal(kv, (N, C, Ho, Wo), jnp.float32)

    scale = 1.0 / np.sqrt(C)
    wq = jax.random.normal(k1, (C, C), jnp.float32) * scale
    bq = jax.random.normal(k2, (C,), jnp.float32) * scale
    wk = jax.random.normal(k3, (C, C), jnp.float32) * scale
    bk = jax.random.normal(k4, (C,), jnp.float32) * scale
    wa = jax.random.normal(k5, (1, C), jnp.float32) * scale
    ba = jax.random.normal(k6, (1,), jnp.float32) * scale
    params = (wq, bq, wk, bk, wa, ba)

    out = jax.block_until_ready(attention_res_block(query, key, value, params))
    ref = jax.block_until_ready(reference(query, key, value, params))

    # bf16 MXU operands in the kernel vs f32 reference -> loose-ish tolerance
    np.testing.assert_allclose(np.asarray(out), np.asarray(ref),
                               rtol=3e-2, atol=3e-2)
    assert out.shape == (N, C, Ho, Wo)

    print("KERNEL_OK")
</pallas_src>

<mosaic_0001>
module attributes {stable_mosaic.version = 11 : i64} {
  func.func @_attn_res_kernel(%arg0: i32, %arg1: memref<1x16x256xbf16, #tpu.memory_space<vmem>>, %arg2: memref<1x8x32x32xf32, #tpu.memory_space<vmem>>, %arg3: memref<8x16xbf16, #tpu.memory_space<vmem>>, %arg4: memref<8x1xf32, #tpu.memory_space<vmem>>, %arg5: memref<8x1xf32, #tpu.memory_space<vmem>>, %arg6: memref<1x1xf32, #tpu.memory_space<vmem>>, %arg7: memref<32x256xf32, #tpu.memory_space<vmem>>, %arg8: memref<256x32xf32, #tpu.memory_space<vmem>>, %arg9: memref<1x8x32x32xf32, #tpu.memory_space<vmem>>) attributes {dimension_semantics = [#tpu.dimension_semantics<parallel>], iteration_bounds = array<i64: 2>, scalar_prefetch = 0 : i64, scratch_operands = 0 : i64, tpu.core_type = #tpu.core_type<tc>, window_params = [{transform_indices = @transform_0, window_bounds = array<i64: 1, 16, 256>}, {transform_indices = @transform_1, window_bounds = array<i64: 1, 8, 32, 32>}, {pipeline_mode = #tpu.pipeline_mode<synchronous>, transform_indices = @transform_2, window_bounds = array<i64: 8, 16>}, {pipeline_mode = #tpu.pipeline_mode<synchronous>, transform_indices = @transform_3, window_bounds = array<i64: 8, 1>}, {pipeline_mode = #tpu.pipeline_mode<synchronous>, transform_indices = @transform_4, window_bounds = array<i64: 8, 1>}, {pipeline_mode = #tpu.pipeline_mode<synchronous>, transform_indices = @transform_5, window_bounds = array<i64: 1, 1>}, {pipeline_mode = #tpu.pipeline_mode<synchronous>, transform_indices = @transform_6, window_bounds = array<i64: 32, 256>}, {pipeline_mode = #tpu.pipeline_mode<synchronous>, transform_indices = @transform_7, window_bounds = array<i64: 256, 32>}, {transform_indices = @transform_8, window_bounds = array<i64: 1, 8, 32, 32>}]} {
    %c0 = arith.constant 0 : index
    %c0_0 = arith.constant 0 : index
    %0 = vector.load %arg3[%c0, %c0_0] : memref<8x16xbf16, #tpu.memory_space<vmem>>, vector<8x16xbf16>
    %c0_1 = arith.constant 0 : index
    %c0_2 = arith.constant 0 : index
    %c0_3 = arith.constant 0 : index
    %1 = vector.load %arg1[%c0_1, %c0_2, %c0_3] : memref<1x16x256xbf16, #tpu.memory_space<vmem>>, vector<1x16x256xbf16>
    %2 = vector.shape_cast %1 : vector<1x16x256xbf16> to vector<16x256xbf16>
    %cst = arith.constant dense<0.000000e+00> : vector<8x256xf32>
    %3 = tpu.matmul %0, %2, %cst {dimension_numbers = #tpu.dot_dimension_numbers<[1], [0], [0], [1], [0, 0, 1, 1], [], []>} : vector<8x16xbf16>, vector<16x256xbf16>, vector<8x256xf32> -> vector<8x256xf32>
    %c0_4 = arith.constant 0 : index
    %c0_5 = arith.constant 0 : index
    %4 = vector.load %arg4[%c0_4, %c0_5] : memref<8x1xf32, #tpu.memory_space<vmem>>, vector<8x1xf32>
    %5 = vector.broadcast %4 : vector<8x1xf32> to vector<8x256xf32>
    %6 = arith.addf %3, %5 : vector<8x256xf32>
    %cst_6 = arith.constant 0.000000e+00 : f32
    %7 = vector.broadcast %cst_6 : f32 to vector<8x256xf32>
    %8 = arith.maximumf %6, %7 : vector<8x256xf32>
    %c0_7 = arith.constant 0 : index
    %c0_8 = arith.constant 0 : index
    %9 = vector.load %arg5[%c0_7, %c0_8] : memref<8x1xf32, #tpu.memory_space<vmem>>, vector<8x1xf32>
    %10 = vector.broadcast %9 : vector<8x1xf32> to vector<8x256xf32>
    %11 = arith.mulf %8, %10 : vector<8x256xf32>
    %cst_9 = arith.constant dense<0.000000e+00> : vector<256xf32>
    %12 = vector.multi_reduction <add>, %11, %cst_9 [0] : vector<8x256xf32> to vector<256xf32>
    %13 = vector.shape_cast %12 : vector<256xf32> to vector<1x256xf32>
    %c0_10 = arith.constant 0 : index
    %c0_11 = arith.constant 0 : index
    %14 = vector.load %arg6[%c0_10, %c0_11] : memref<1x1xf32, #tpu.memory_space<vmem>>, vector<1x1xf32>
    %15 = vector.broadcast %14 : vector<1x1xf32> to vector<1x256xf32>
    %16 = arith.addf %13, %15 : vector<1x256xf32>
    %17 = arith.negf %16 : vector<1x256xf32>
    %18 = math.exp %17 : vector<1x256xf32>
    %cst_12 = arith.constant 1.000000e+00 : f32
    %19 = vector.broadcast %cst_12 : f32 to vector<1x256xf32>
    %20 = arith.addf %19, %18 : vector<1x256xf32>
    %21 = arith.divf %19, %20 : vector<1x256xf32>
    %c0_13 = arith.constant 0 : index
    %c0_14 = arith.constant 0 : index
    %22 = vector.load %arg7[%c0_13, %c0_14] : memref<32x256xf32, #tpu.memory_space<vmem>>, vector<32x256xf32>
    %23 = vector.broadcast %21 : vector<1x256xf32> to vector<32x256xf32>
    %24 = arith.mulf %22, %23 : vector<32x256xf32>
    %c0_15 = arith.constant 0 : index
    %c0_16 = arith.constant 0 : index
    %25 = vector.load %arg8[%c0_15, %c0_16] : memref<256x32xf32, #tpu.memory_space<vmem>>, vector<256x32xf32>
    %cst_17 = arith.constant dense<0.000000e+00> : vector<32x32xf32>
    %26 = tpu.matmul %24, %25, %cst_17 {dimension_numbers = #tpu.dot_dimension_numbers<[1], [0], [0], [1], [0, 0, 1, 1], [], []>} : vector<32x256xf32>, vector<256x32xf32>, vector<32x32xf32> -> vector<32x32xf32>
    %c0_18 = arith.constant 0 : index
    %c0_19 = arith.constant 0 : index
    %c0_20 = arith.constant 0 : index
    %c0_21 = arith.constant 0 : index
    %27 = vector.load %arg2[%c0_18, %c0_19, %c0_20, %c0_21] : memref<1x8x32x32xf32, #tpu.memory_space<vmem>>, vector<1x8x32x32xf32>
    %28 = vector.shape_cast %27 : vector<1x8x32x32xf32> to vector<8x32x32xf32>
    %29 = vector.shape_cast %26 : vector<32x32xf32> to vector<1x32x32xf32>
    %30 = vector.broadcast %29 : vector<1x32x32xf32> to vector<8x32x32xf32>
    %31 = arith.mulf %28, %30 : vector<8x32x32xf32>
    %c0_22 = arith.constant 0 : index
    %c0_23 = arith.constant 0 : index
    %c0_24 = arith.constant 0 : index
    %c0_25 = arith.constant 0 : index
    %32 = vector.load %arg9[%c0_22, %c0_23, %c0_24, %c0_25] : memref<1x8x32x32xf32, #tpu.memory_space<vmem>>, vector<1x8x32x32xf32>
    %33 = vector.shape_cast %32 : vector<1x8x32x32xf32> to vector<8x32x32xf32>
    %34 = vector.shape_cast %31 : vector<8x32x32xf32> to vector<1x8x32x32xf32>
    tpu.vector_store %arg9[%c0_22, %c0_23, %c0_24, %c0_25], %34 {strides = array<i32>} : memref<1x8x32x32xf32, #tpu.memory_space<vmem>>, vector<1x8x32x32xf32>,
    return
  }
  func.func @transform_0(%arg0: i32) -> (i32, i32, i32) {
    %c0_i32 = arith.constant 0 : i32
    %c0_i32_0 = arith.constant 0 : i32
    %c0_i32_1 = arith.constant 0 : i32
    return %arg0, %c0_i32, %c0_i32_0 : i32, i32, i32
  }
  func.func @transform_1(%arg0: i32) -> (i32, i32, i32, i32) {
    %c0_i32 = arith.constant 0 : i32
    %c0_i32_0 = arith.constant 0 : i32
    %c0_i32_1 = arith.constant 0 : i32
    %c0_i32_2 = arith.constant 0 : i32
    return %arg0, %c0_i32, %c0_i32_0, %c0_i32_1 : i32, i32, i32, i32
  }
  func.func @transform_2(%arg0: i32) -> (i32, i32) {
    %c0_i32 = arith.constant 0 : i32
    %c0_i32_0 = arith.constant 0 : i32
    %c0_i32_1 = arith.constant 0 : i32
    return %c0_i32, %c0_i32_0 : i32, i32
  }
  func.func @transform_3(%arg0: i32) -> (i32, i32) {
    %c0_i32 = arith.constant 0 : i32
    %c0_i32_0 = arith.constant 0 : i32
    %c0_i32_1 = arith.constant 0 : i32
    return %c0_i32, %c0_i32_0 : i32, i32
  }
  func.func @transform_4(%arg0: i32) -> (i32, i32) {
    %c0_i32 = arith.constant 0 : i32
    %c0_i32_0 = arith.constant 0 : i32
    %c0_i32_1 = arith.constant 0 : i32
    return %c0_i32, %c0_i32_0 : i32, i32
  }
  func.func @transform_5(%arg0: i32) -> (i32, i32) {
    %c0_i32 = arith.constant 0 : i32
    %c0_i32_0 = arith.constant 0 : i32
    %c0_i32_1 = arith.constant 0 : i32
    return %c0_i32, %c0_i32_0 : i32, i32
  }
  func.func @transform_6(%arg0: i32) -> (i32, i32) {
    %c0_i32 = arith.constant 0 : i32
    %c0_i32_0 = arith.constant 0 : i32
    %c0_i32_1 = arith.constant 0 : i32
    return %c0_i32, %c0_i32_0 : i32, i32
  }
  func.func @transform_7(%arg0: i32) -> (i32, i32) {
    %c0_i32 = arith.constant 0 : i32
    %c0_i32_0 = arith.constant 0 : i32
    %c0_i32_1 = arith.constant 0 : i32
    return %c0_i32, %c0_i32_0 : i32, i32
  }
  func.func @transform_8(%arg0: i32) -> (i32, i32, i32, i32) {
    %c0_i32 = arith.constant 0 : i32
    %c0_i32_0 = arith.constant 0 : i32
    %c0_i32_1 = arith.constant 0 : i32
    %c0_i32_2 = arith.constant 0 : i32
    return %arg0, %c0_i32, %c0_i32_0, %c0_i32_1 : i32, i32, i32, i32
  }
}

</mosaic_0001>

<llo_original>
// kernel: tpu_custom_call.1
$region0: #{tpu_custom_call.1}
  #allocation0 [shape = 'u32[]', space=smem, size = 0x4, offset = 0x4, fixed_abs, tag = 'smem constant byte address 0x4 - core index']
  #allocation1 [shape = 'u32[72,128]{1,0:T(1,128)}', space=vmem, size = 0x9000, scoped, tag = 'internal scratch']
  #allocation2 [shape = 'f32[1,1]{1,0:T(1,128)S(1)}', space=vmem, size = 0x200, scoped, tag = 'scoped memory for tpu_custom_call.1']
  %s0 = inlined_call_operand.vmem [shape: bf16[2,16,256], index: 0, kind: input, shape index: {}]
  %s1 = inlined_call_operand.hbm [shape: f32[2,8,32,32], index: 1, kind: input, shape index: {}]
  %s2 = inlined_call_operand.vmem [shape: bf16[8,16], index: 2, kind: input, shape index: {}]
  %s3 = inlined_call_operand.vmem [shape: f32[8,1], index: 3, kind: input, shape index: {}]
  %s4 = inlined_call_operand.vmem [shape: f32[8,1], index: 4, kind: input, shape index: {}]
  %s5 = inlined_call_operand.<no memory space> [shape: f32[1,1], index: 5, kind: input, shape index: {}]
  %s6 = inlined_call_operand.vmem [shape: f32[32,256], index: 6, kind: input, shape index: {}]
  %s7 = inlined_call_operand.vmem [shape: f32[256,32], index: 7, kind: input, shape index: {}]
  %s8 = inlined_call_operand.hbm [shape: f32[2,8,32,32], index: 8, kind: output, shape index: {}]
  %s9 = sld [smem:[#allocation0]]
  $region69: #{tpu_custom_call.1} parent=0
    _
  %s11 = ssub.s32 1, %s9
  %s12 = scalar_select 0, %s11, %s9
  %v13 = vstv %s5
  %14 = vst [vmem:[#allocation2] sm:$0x1] %v13
  $region1: #{tpu_custom_call.1} parent=0
    #allocation3 [shape = 'u8[262144]{0}', space=vmem, size = 0x40000, scoped, tag = 'input window, operand 1']
    #allocation4 [shape = 's32[2]{0}', space=sflag, size = 0x8, scoped, tag = 'scoped memory for tpu_custom_call.1']
    #allocation5 [shape = 's32[2]{0}', space=sflag, size = 0x8, scoped, tag = 'scoped memory for tpu_custom_call.1']
    #allocation6 [shape = 'u8[262144]{0}', space=vmem, size = 0x40000, scoped, tag = 'output window, operand 0']
    %15 = vsyncpa [#allocation4], 0
    %s16 = scalar_lea.sflag [#allocation4], 1
    %17 = vsyncpa %s16, 0
    %18 = vsyncpa [#allocation5], 0
    %s19 = scalar_lea.sflag [#allocation5], 1
    %20 = vsyncpa %s19, 0
    loop: start=0, step=1, limit=4
    $region2: #{tpu_custom_call.1} parent=1 // loop_pre_header
      _
    $region3: #{tpu_custom_call.1} parent=1 // loop_header
      %s22 = sphi 0, %s26
      %p23 = scmp.ge.s32.totalorder %s22, 4
      %s32 = sphi 0, %s34
      %s35 = sphi 0, %s32
      %s36 = sphi 0, %s35
      %s52 = sphi 0, %s36
      %s58 = sphi 0, %s60
      %s61 = sphi 0, %s58
      %s62 = sphi 0, %s61
      %s78 = sphi 0, %s62
      %s82 = sphi 0, %s82
      %s84 = sphi 0, %s82
      %s85 = sphi 0, %s84
      %s99 = sphi 0, %s85
      %s103 = sphi 0, %s103
      %s105 = sphi 0, %s103
      %s106 = sphi 0, %s105
      %s120 = sphi 0, %s106
      %s124 = sphi 0, %s124
      %s126 = sphi 0, %s124
      %s127 = sphi 0, %s126
      %s141 = sphi 0, %s127
      %s145 = sphi 0, %s145
      %s147 = sphi 0, %s145
      %s148 = sphi 0, %s147
      %s162 = sphi 0, %s148
      %s166 = sphi 0, %s166
      %s168 = sphi 0, %s166
      %s169 = sphi 0, %s168
      %s183 = sphi 0, %s169
      %s187 = sphi 0, %s187
      %s189 = sphi 0, %s187
      %s190 = sphi 0, %s189
      %s204 = sphi 0, %s190
      %s210 = sphi 0, %s212
      %s213 = sphi 0, %s210
      %s214 = sphi 0, %s213
      %s230 = sphi 0, %s214
    $region4: #{tpu_custom_call.1} parent=1 // loop_header_branch
      %25 = sbr.rel (%p23) target = $region8
    $region5: #{tpu_custom_call.1} parent=1 // loop_body
      %s27 = ssub.s32 %s22, 1
      %s28 = ssub.s32 %s22, 2
      %s29 = sadd.s32 %s22, 1
      %s30 = ssub.s32 %s22, %s29
      %p31 = scmp.eq.s32.totalorder %s30, 0
      %s33 = sadd.s32 %s32, 1
      %s34 = scalar_select %p31, %s32, %s33
      %p37 = pneg %p31
      %p38 = scmp.eq.s32.totalorder %s22, 1
      %p39 = por %p37, %p38
      %p40 = scmp.ne.s32.totalorder %s32, %s35
      %p41 = scmp.eq.s32.totalorder %s22, 0
      %p42 = por %p40, %p41
      %p43 = scmp.ne.s32.totalorder %s32, %s35
      %p44 = scmp.eq.s32.totalorder %s27, 1
      %p45 = por %p43, %p44
      %p46 = scmp.ne.s32.totalorder %s35, %s36
      %p47 = scmp.eq.s32.totalorder %s27, 0
      %p48 = por %p46, %p47
      %p49 = scmp.ne.s32.totalorder %s35, %s36
      %p50 = scmp.eq.s32.totalorder %s28, 1
      %p51 = por %p49, %p50
      %p53 = scmp.ne.s32.totalorder %s36, %s52
      %p54 = scmp.eq.s32.totalorder %s28, 0
      %p55 = por %p53, %p54
      %s56 = ssub.s32 %s22, %s29
      %p57 = scmp.eq.s32.totalorder %s56, 0
      %s59 = sadd.s32 %s58, 1
      %s60 = scalar_select %p57, %s58, %s59
      %p63 = pneg %p57
      %p64 = scmp.eq.s32.totalorder %s22, 1
      %p65 = por %p63, %p64
      %p66 = scmp.ne.s32.totalorder %s58, %s61
      %p67 = scmp.eq.s32.totalorder %s22, 0
      %p68 = por %p66, %p67
      %p69 = scmp.ne.s32.totalorder %s58, %s61
      %p70 = scmp.eq.s32.totalorder %s27, 1
      %p71 = por %p69, %p70
      %p72 = scmp.ne.s32.totalorder %s61, %s62
      %p73 = scmp.eq.s32.totalorder %s27, 0
      %p74 = por %p72, %p73
      %p75 = scmp.ne.s32.totalorder %s61, %s62
      %p76 = scmp.eq.s32.totalorder %s28, 1
      %p77 = por %p75, %p76
      %p79 = scmp.ne.s32.totalorder %s62, %s78
      %p80 = scmp.eq.s32.totalorder %s28, 0
      %p81 = por %p79, %p80
      %s83 = sadd.s32 %s82, 1
      %p86 = scmp.eq.s32.totalorder %s22, 1
      %p87 = scmp.ne.s32.totalorder %s82, %s84
      %p88 = scmp.eq.s32.totalorder %s22, 0
      %p89 = por %p87, %p88
      %p90 = scmp.ne.s32.totalorder %s82, %s84
      %p91 = scmp.eq.s32.totalorder %s27, 1
      %p92 = por %p90, %p91
      %p93 = scmp.ne.s32.totalorder %s84, %s85
      %p94 = scmp.eq.s32.totalorder %s27, 0
      %p95 = por %p93, %p94
      %p96 = scmp.ne.s32.totalorder %s84, %s85
      %p97 = scmp.eq.s32.totalorder %s28, 1
      %p98 = por %p96, %p97
      %p100 = scmp.ne.s32.totalorder %s85, %s99
      %p101 = scmp.eq.s32.totalorder %s28, 0
      %p102 = por %p100, %p101
      %s104 = sadd.s32 %s103, 1
      %p107 = scmp.eq.s32.totalorder %s22, 1
      %p108 = scmp.ne.s32.totalorder %s103, %s105
      %p109 = scmp.eq.s32.totalorder %s22, 0
      %p110 = por %p108, %p109
      %p111 = scmp.ne.s32.totalorder %s103, %s105
      %p112 = scmp.eq.s32.totalorder %s27, 1
      %p113 = por %p111, %p112
      %p114 = scmp.ne.s32.totalorder %s105, %s106
      %p115 = scmp.eq.s32.totalorder %s27, 0
      %p116 = por %p114, %p115
      %p117 = scmp.ne.s32.totalorder %s105, %s106
      %p118 = scmp.eq.s32.totalorder %s28, 1
      %p119 = por %p117, %p118
      %p121 = scmp.ne.s32.totalorder %s106, %s120
      %p122 = scmp.eq.s32.totalorder %s28, 0
      %p123 = por %p121, %p122
      %s125 = sadd.s32 %s124, 1
      %p128 = scmp.eq.s32.totalorder %s22, 1
      %p129 = scmp.ne.s32.totalorder %s124, %s126
      %p130 = scmp.eq.s32.totalorder %s22, 0
      %p131 = por %p129, %p130
      %p132 = scmp.ne.s32.totalorder %s124, %s126
      %p133 = scmp.eq.s32.totalorder %s27, 1
      %p134 = por %p132, %p133
      %p135 = scmp.ne.s32.totalorder %s126, %s127
      %p136 = scmp.eq.s32.totalorder %s27, 0
      %p137 = por %p135, %p136
      %p138 = scmp.ne.s32.totalorder %s126, %s127
      %p139 = scmp.eq.s32.totalorder %s28, 1
      %p140 = por %p138, %p139
      %p142 = scmp.ne.s32.totalorder %s127, %s141
      %p143 = scmp.eq.s32.totalorder %s28, 0
      %p144 = por %p142, %p143
      %s146 = sadd.s32 %s145, 1
      %p149 = scmp.eq.s32.totalorder %s22, 1
      %p150 = scmp.ne.s32.totalorder %s145, %s147
      %p151 = scmp.eq.s32.totalorder %s22, 0
      %p152 = por %p150, %p151
      %p153 = scmp.ne.s32.totalorder %s145, %s147
      %p154 = scmp.eq.s32.totalorder %s27, 1
      %p155 = por %p153, %p154
      %p156 = scmp.ne.s32.totalorder %s147, %s148
      %p157 = scmp.eq.s32.totalorder %s27, 0
      %p158 = por %p156, %p157
      %p159 = scmp.ne.s32.totalorder %s147, %s148
      %p160 = scmp.eq.s32.totalorder %s28, 1
      %p161 = por %p159, %p160
      %p163 = scmp.ne.s32.totalorder %s148, %s162
      %p164 = scmp.eq.s32.totalorder %s28, 0
      %p165 = por %p163, %p164
      %s167 = sadd.s32 %s166, 1
      %p170 = scmp.eq.s32.totalorder %s22, 1
      %p171 = scmp.ne.s32.totalorder %s166, %s168
      %p172 = scmp.eq.s32.totalorder %s22, 0
      %p173 = por %p171, %p172
      %p174 = scmp.ne.s32.totalorder %s166, %s168
      %p175 = scmp.eq.s32.totalorder %s27, 1
      %p176 = por %p174, %p175
      %p177 = scmp.ne.s32.totalorder %s168, %s169
      %p178 = scmp.eq.s32.totalorder %s27, 0
      %p179 = por %p177, %p178
      %p180 = scmp.ne.s32.totalorder %s168, %s169
      %p181 = scmp.eq.s32.totalorder %s28, 1
      %p182 = por %p180, %p181
      %p184 = scmp.ne.s32.totalorder %s169, %s183
      %p185 = scmp.eq.s32.totalorder %s28, 0
      %p186 = por %p184, %p185
      %s188 = sadd.s32 %s187, 1
      %p191 = scmp.eq.s32.totalorder %s22, 1
      %p192 = scmp.ne.s32.totalorder %s187, %s189
      %p193 = scmp.eq.s32.totalorder %s22, 0
      %p194 = por %p192, %p193
      %p195 = scmp.ne.s32.totalorder %s187, %s189
      %p196 = scmp.eq.s32.totalorder %s27, 1
      %p197 = por %p195, %p196
      %p198 = scmp.ne.s32.totalorder %s189, %s190
      %p199 = scmp.eq.s32.totalorder %s27, 0
      %p200 = por %p198, %p199
      %p201 = scmp.ne.s32.totalorder %s189, %s190
      %p202 = scmp.eq.s32.totalorder %s28, 1
      %p203 = por %p201, %p202
      %p205 = scmp.ne.s32.totalorder %s190, %s204
      %p206 = scmp.eq.s32.totalorder %s28, 0
      %p207 = por %p205, %p206
      %s208 = ssub.s32 %s22, %s29
      %p209 = scmp.eq.s32.totalorder %s208, 0
      %s211 = sadd.s32 %s210, 1
      %s212 = scalar_select %p209, %s210, %s211
      %p215 = pneg %p209
      %p216 = scmp.eq.s32.totalorder %s22, 1
      %p217 = por %p215, %p216
      %p218 = scmp.ne.s32.totalorder %s210, %s213
      %p219 = scmp.eq.s32.totalorder %s22, 0
      %p220 = por %p218, %p219
      %p221 = scmp.ne.s32.totalorder %s210, %s213
      %p222 = scmp.eq.s32.totalorder %s27, 1
      %p223 = por %p221, %p222
      %p224 = scmp.ne.s32.totalorder %s213, %s214
      %p225 = scmp.eq.s32.totalorder %s27, 0
      %p226 = por %p224, %p225
      %p227 = scmp.ne.s32.totalorder %s213, %s214
      %p228 = scmp.eq.s32.totalorder %s28, 1
      %p229 = por %p227, %p228
      %p231 = scmp.ne.s32.totalorder %s214, %s230
      %p232 = scmp.eq.s32.totalorder %s28, 0
      %p233 = por %p231, %p232
      %p234 = scmp.le.s32.totalorder 1, %s22
      %p235 = scmp.lt.s32.totalorder %s22, 3
      %p236 = pnand %p234, %p235
      %p237 = pneg %p236
      // Predicated region
      $region9: #{tpu_custom_call.1} parent=5 // pred_check
        _
      $region10: #{tpu_custom_call.1} parent=5 // pred_check_branch
        %239 = sbr.rel (%p236) target = $region12
      $region11: #{tpu_custom_call.1} parent=5 // pred_region
        %s240 = ssub.s32 %s22, 1
        // Predicated region
        $region13: #{tpu_custom_call.1} parent=11 // pred_check
          %p241 = pneg %p95
        $region14: #{tpu_custom_call.1} parent=11 // pred_check_branch
          %243 = sbr.rel (%p241) target = $region16
        $region15: #{tpu_custom_call.1} parent=11 // pred_region
          _
        $region16: #{tpu_custom_call.1} parent=11 // pred_fallthru
          _
        // Predicated region
        $region17: #{tpu_custom_call.1} parent=11 // pred_check
          %p244 = pneg %p116
        $region18: #{tpu_custom_call.1} parent=11 // pred_check_branch
          %246 = sbr.rel (%p244) target = $region20
        $region19: #{tpu_custom_call.1} parent=11 // pred_region
          _
        $region20: #{tpu_custom_call.1} parent=11 // pred_fallthru
          _
        // Predicated region
        $region21: #{tpu_custom_call.1} parent=11 // pred_check
          %p247 = pneg %p137
        $region22: #{tpu_custom_call.1} parent=11 // pred_check_branch
          %249 = sbr.rel (%p247) target = $region24
        $region23: #{tpu_custom_call.1} parent=11 // pred_region
          _
        $region24: #{tpu_custom_call.1} parent=11 // pred_fallthru
          _
        // Predicated region
        $region25: #{tpu_custom_call.1} parent=11 // pred_check
          %p250 = pneg %p158
        $region26: #{tpu_custom_call.1} parent=11 // pred_check_branch
          %252 = sbr.rel (%p250) target = $region28
        $region27: #{tpu_custom_call.1} parent=11 // pred_region
          _
        $region28: #{tpu_custom_call.1} parent=11 // pred_fallthru
          _
        // Predicated region
        $region29: #{tpu_custom_call.1} parent=11 // pred_check
          %p253 = pneg %p179
        $region30: #{tpu_custom_call.1} parent=11 // pred_check_branch
          %255 = sbr.rel (%p253) target = $region32
        $region31: #{tpu_custom_call.1} parent=11 // pred_region
          _
        $region32: #{tpu_custom_call.1} parent=11 // pred_fallthru
          _
        // Predicated region
        $region33: #{tpu_custom_call.1} parent=11 // pred_check
          %p256 = pneg %p200
        $region34: #{tpu_custom_call.1} parent=11 // pred_check_branch
          %258 = sbr.rel (%p256) target = $region36
        $region35: #{tpu_custom_call.1} parent=11 // pred_region
          _
        $region36: #{tpu_custom_call.1} parent=11 // pred_fallthru
          _
      $region12: #{tpu_custom_call.1} parent=5 // pred_fallthru
        _
      %p259 = scmp.lt.s32.totalorder %s22, 2
      // Predicated region
      $region37: #{tpu_custom_call.1} parent=5 // pred_check
        %p260 = pneg %p259
      $region38: #{tpu_custom_call.1} parent=5 // pred_check_branch
        %262 = sbr.rel (%p260) target = $region40
      $region39: #{tpu_custom_call.1} parent=5 // pred_region
        // Predicated region
        $region41: #{tpu_custom_call.1} parent=39 // pred_check
          %p263 = pneg %p42
        $region42: #{tpu_custom_call.1} parent=39 // pred_check_branch
          %265 = sbr.rel (%p263) target = $region44
        $region43: #{tpu_custom_call.1} parent=39 // pred_region
          %p266 = scmp.lt.s32.totalorder %s22, 1
          %s267 = scalar_select %p266, %s22, 1
          %s268 = smul.addr %s267, 4
          %s269 = smul.addr %s268, 4
          %s270 = scalar_lea.vmem %s0, %s269
        $region44: #{tpu_custom_call.1} parent=39 // pred_fallthru
          _
        // Predicated region
        $region45: #{tpu_custom_call.1} parent=39 // pred_check
          %p271 = pneg %p68
        $region46: #{tpu_custom_call.1} parent=39 // pred_check_branch
          %273 = sbr.rel (%p271) target = $region48
        $region47: #{tpu_custom_call.1} parent=39 // pred_region
          %s274 = sand.u32 %s58, 1
          %s275 = scalar_lea.sflag [#allocation4], %s274
          %s276 = sand.u32 %s58, 1
          %s277 = smul.addr %s276, 256
          %s278 = scalar_lea.vmem [#allocation3], %s277
          %280 = vsyncadd %s275, 0
          %s281 = smul.addr %s22, 32
          %s282 = smul.addr %s281, 8
          %s283 = scalar_lea.hbm %s1, %s282
          %s284 = sshll.u32 %s283, 4
          %s285 = int_to_ptr.hbm [resolvable:$true] %s284
          %s286 = sshll.u32 %s278, 4
          %s287 = int_to_ptr.vmem [resolvable:$true] %s286
          %292 = dma.hbm_to_vmem [thread:$0]  %s285, 4096, %s287, %s275, 128, 128, 8
        $region48: #{tpu_custom_call.1} parent=39 // pred_fallthru
          _
      $region40: #{tpu_custom_call.1} parent=5 // pred_fallthru
        _
      %p293 = scmp.le.s32.totalorder 1, %s22
      %p294 = scmp.lt.s32.totalorder %s22, 3
      %p295 = pnand %p293, %p294
      %p296 = pneg %p295
      // Predicated region
      $region49: #{tpu_custom_call.1} parent=5 // pred_check
        _
      $region50: #{tpu_custom_call.1} parent=5 // pred_check_branch
        %298 = sbr.rel (%p295) target = $region52
      $region51: #{tpu_custom_call.1} parent=5 // pred_region
        %s299 = ssub.s32 %s22, 1
        %s300 = sand.u32 %s61, 1
        %s301 = scalar_lea.sflag [#allocation4], %s300
        %s302 = sand.u32 %s61, 1
        %s303 = smul.addr %s302, 256
        %s304 = scalar_lea.vmem [#allocation3], %s303
        // Predicated region
        $region53: #{tpu_custom_call.1} parent=51 // pred_check
          %p305 = pneg %p74
        $region54: #{tpu_custom_call.1} parent=51 // pred_check_branch
          %307 = sbr.rel (%p305) target = $region56
        $region55: #{tpu_custom_call.1} parent=51 // pred_region
          %309 = dma.done %s301, 4096
        $region56: #{tpu_custom_call.1} parent=51 // pred_fallthru
          _
        %p310 = scmp.lt.s32.totalorder %s27, 1
        %s311 = scalar_select %p310, %s27, 1
        %s312 = smul.addr %s311, 4
        %s313 = smul.addr %s312, 4
        %s314 = scalar_lea.vmem %s0, %s313
        %p315 = pneg %p48
        %p316 = pneg %p45
        %s317 = sand.u32 %s61, 1
        %s318 = scalar_lea.sflag [#allocation4], %s317
        %s319 = sand.u32 %s61, 1
        %s320 = smul.addr %s319, 256
        %s321 = scalar_lea.vmem [#allocation3], %s320
        %p322 = pneg %p74
        %p323 = pneg %p71
        %p324 = pneg %p95
        %p325 = pneg %p92
        %p326 = pneg %p116
        %p327 = pneg %p113
        %p328 = pneg %p137
        %p329 = pneg %p134
        %p330 = pneg %p158
        %p331 = pneg %p155
        %p332 = pneg %p179
        %p333 = pneg %p176
        %p334 = pneg %p200
        %p335 = pneg %p197
        %p336 = pneg %p226
        %p337 = pneg %p223
        %s338 = sand.u32 %s213, 1
        %s339 = scalar_lea.sflag [#allocation5], %s338
        %s340 = sand.u32 %s213, 1
        %s341 = smul.addr %s340, 256
        %s342 = scalar_lea.vmem [#allocation6], %s341
        %p343 = scmp.lt.s32.totalorder %s27, 1
        %s344 = scalar_select %p343, %s27, 1
        %s345 = smul.addr %s344, 4
        %s346 = smul.addr %s345, 4
        %s347 = scalar_lea.vmem %s0, %s346
        %v349 = vld [vmem:[%s2] sm:$0xf]
        %v350 = vld [vmem:[%s347] sm:$0xff]
        %v351 = vld [vmem:[%s347 + $0x8] sm:$0xff]
        %v352 = vld [vmem:[%s3] sm:$0xff]
        %354 = vset.pattern.permute.xlu0 0
        %355 = vperm.xlu0 %354, %v352
        %v356 = vpop.permute.xlu0 %355
        %v360 = vunpack.c.l.b16 %v350
        %v361 = vunpack.c.h.b16 %v350
        %v362 = vunpack.c.l.b16 %v351
        %v363 = vunpack.c.h.b16 %v351
        %v364 = vpack.c.b16 %v362, %v360
        %v365 = vpack.c.b16 %v363, %v361
        %vm368 = vcmask 130048
        %v370 = vsel %vm368, %v349, 0
        %372 = vmatpush.bf16.msra.mxu0 0
        %373 = vmatpush.bf16.msra.mxu0 0
        %374 = vmatpush.bf16.msra.mxu0 0
        %375 = vmatpush.bf16.msra.mxu0 0
        %376 = vmatpush.bf16.msra.mxu0 0
        %377 = vmatpush.bf16.msra.mxu0 0
        %378 = vmatpush.bf16.msra.mxu0 0
        %379 = vmatpush.bf16.msra.mxu0 %v364
        %380 = vmatmul.bf16.gmra.mxu0 %v370
        %v381 = vpop.f32.mrf.mxu0
        %v382 = vadd.f32 %v356, %v381
        %v383 = vpop.f32.mrf.mxu0
        %384 = vdwg.mxu0
        %385 = vmatpush.bf16.msra.mxu0 0
        %386 = vmatpush.bf16.msra.mxu0 0
        %387 = vmatpush.bf16.msra.mxu0 0
        %388 = vmatpush.bf16.msra.mxu0 0
        %389 = vmatpush.bf16.msra.mxu0 0
        %390 = vmatpush.bf16.msra.mxu0 0
        %391 = vmatpush.bf16.msra.mxu0 0
        %392 = vmatpush.bf16.msra.mxu0 %v365
        %393 = vmatmul.bf16.gmra.mxu0 %v370
        %v394 = vpop.f32.mrf.mxu0
        %v395 = vadd.f32 %v356, %v394
        %v396 = vpop.f32.mrf.mxu0
        %397 = vdwg.mxu0
        %v398 = vmax.f32 %v382, 0.0
        %v399 = vmax.f32 %v395, 0.0
        %v400 = vld [vmem:[%s4] sm:$0xff]
        %402 = vset.pattern.permute.xlu0 0
        %403 = vperm.xlu0 %402, %v400
        %v404 = vpop.permute.xlu0 %403
        %v406 = vmul.f32 %v398, %v404
        %v407 = vmul.f32 %v399, %v404
        %v408 = vrot.slane %v406, 4
        %v409 = vadd.f32 %v406, %v408
        %v410 = vrot.slane %v409, 2
        %v411 = vadd.f32 %v409, %v410
        %v412 = vrot.slane %v411, 1
        %v413 = vadd.f32 %v411, %v412
        %v414 = vrot.slane %v407, 4
        %v415 = vadd.f32 %v407, %v414
        %v416 = vrot.slane %v415, 2
        %v417 = vadd.f32 %v415, %v416
        %v418 = vrot.slane %v417, 1
        %v419 = vadd.f32 %v417, %v418
        %v420 = vld [vmem:[#allocation2] sm:$0x1]
        %422 = vset.pattern.permute.xlu0 0
        %423 = vperm.xlu0 %422, %v420
        %v424 = vpop.permute.xlu0 %423
        %v426 = vperm.slane %v424, 0
        %v427 = vadd.f32 %v413, %v426
        %v428 = vadd.f32 %v419, %v426
        %v429 = vxor.u32 %v427, 2147483648
        %v430 = vxor.u32 %v428, 2147483648
        %v431 = vmul.f32 %v429, 1.442695
        %v432 = vpow.pop %v431
        %v433 = vmul.f32 %v430, 1.442695
        %v434 = vpow.pop %v433
        %v435 = vadd.f32 %v432, 1.0
        %v436 = vadd.f32 %v434, 1.0
        %v437 = vrcp.pop %v435
        %v438 = vmul.f32 %v435, %v437
        %v439 = vsub.f32 1.0, %v438
        %v440 = vmul.f32 %v437, %v439
        %v441 = vadd.f32 %v437, %v440
        %vm442 = vweird.f32 %v435
        %vm443 = vweird.f32 %v437
        %vm444 = vmor %vm442, %vm443
        %v445 = vsel %vm444, %v437, %v441
        %v446 = vand.u32 2147483647, %v435
        %vm447 = vcmp.eq.f32.partialorder %v446, 8.507059e+37
        %v448 = vand.u32 %v435, 2147483648
        %v449 = vor.u32 1.1754944e-38, %v448
        %v450 = vsel %vm447, %v449, %v445
        %v451 = vmul.f32 1.0, %v450
        %v452 = vrcp.pop %v436
        %v453 = vmul.f32 %v436, %v452
        %v454 = vsub.f32 1.0, %v453
        %v455 = vmul.f32 %v452, %v454
        %v456 = vadd.f32 %v452, %v455
        %vm457 = vweird.f32 %v436
        %vm458 = vweird.f32 %v452
        %vm459 = vmor %vm457, %vm458
        %v460 = vsel %vm459, %v452, %v456
        %v461 = vand.u32 2147483647, %v436
        %vm462 = vcmp.eq.f32.partialorder %v461, 8.507059e+37
        %v463 = vand.u32 %v436, 2147483648
        %v464 = vor.u32 1.1754944e-38, %v463
        %v465 = vsel %vm462, %v464, %v460
        %v466 = vmul.f32 1.0, %v465
        %v467 = vld [vmem:[%s6] sm:$0xff]
        %v468 = vld [vmem:[%s6 + $0x8] sm:$0xff]
        %v469 = vld [vmem:[%s6 + $0x10] sm:$0xff]
        %v470 = vld [vmem:[%s6 + $0x18] sm:$0xff]
        %v471 = vld [vmem:[%s6 + $0x20] sm:$0xff]
        %v472 = vld [vmem:[%s6 + $0x28] sm:$0xff]
        %v473 = vld [vmem:[%s6 + $0x30] sm:$0xff]
        %v474 = vld [vmem:[%s6 + $0x38] sm:$0xff]
        %v475 = vmul.f32 %v467, %v451
        %v476 = vmul.f32 %v468, %v466
        %v477 = vmul.f32 %v469, %v451
        %v478 = vmul.f32 %v470, %v466
        %v479 = vmul.f32 %v471, %v451
        %v480 = vmul.f32 %v472, %v466
        %v481 = vmul.f32 %v473, %v451
        %v482 = vmul.f32 %v474, %v466
        %v483 = vld [vmem:[%s7] sm:$0xff]
        %v484 = vld [vmem:[%s7 + $0x8] sm:$0xff]
        %v485 = vld [vmem:[%s7 + $0x10] sm:$0xff]
        %v486 = vld [vmem:[%s7 + $0x18] sm:$0xff]
        %v487 = vld [vmem:[%s7 + $0x20] sm:$0xff]
        %v488 = vld [vmem:[%s7 + $0x28] sm:$0xff]
        %v489 = vld [vmem:[%s7 + $0x30] sm:$0xff]
        %v490 = vld [vmem:[%s7 + $0x38] sm:$0xff]
        %v491 = vld [vmem:[%s7 + $0x40] sm:$0xff]
        %v492 = vld [vmem:[%s7 + $0x48] sm:$0xff]
        %v493 = vld [vmem:[%s7 + $0x50] sm:$0xff]
        %v494 = vld [vmem:[%s7 + $0x58] sm:$0xff]
        %v495 = vld [vmem:[%s7 + $0x60] sm:$0xff]
        %v496 = vld [vmem:[%s7 + $0x68] sm:$0xff]
        %v497 = vld [vmem:[%s7 + $0x70] sm:$0xff]
        %v498 = vld [vmem:[%s7 + $0x78] sm:$0xff]
        %v499 = vld [vmem:[%s7 + $0x80] sm:$0xff]
        %v500 = vld [vmem:[%s7 + $0x88] sm:$0xff]
        %v501 = vld [vmem:[%s7 + $0x90] sm:$0xff]
        %v502 = vld [vmem:[%s7 + $0x98] sm:$0xff]
        %v503 = vld [vmem:[%s7 + $0xa0] sm:$0xff]
        %v504 = vld [vmem:[%s7 + $0xa8] sm:$0xff]
        %v505 = vld [vmem:[%s7 + $0xb0] sm:$0xff]
        %v506 = vld [vmem:[%s7 + $0xb8] sm:$0xff]
        %v507 = vld [vmem:[%s7 + $0xc0] sm:$0xff]
        %v508 = vld [vmem:[%s7 + $0xc8] sm:$0xff]
        %v509 = vld [vmem:[%s7 + $0xd0] sm:$0xff]
        %v510 = vld [vmem:[%s7 + $0xd8] sm:$0xff]
        %v511 = vld [vmem:[%s7 + $0xe0] sm:$0xff]
        %v512 = vld [vmem:[%s7 + $0xe8] sm:$0xff]
        %v513 = vld [vmem:[%s7 + $0xf0] sm:$0xff]
        %v514 = vld [vmem:[%s7 + $0xf8] sm:$0xff]
        %515 = vmatpush.msra.mxu0 %v498
        %516 = vmatpush.msra.mxu0 %v497
        %517 = vmatpush.msra.mxu0 %v496
        %518 = vmatpush.msra.mxu0 %v495
        %519 = vmatpush.msra.mxu0 %v494
        %520 = vmatpush.msra.mxu0 %v493
        %521 = vmatpush.msra.mxu0 %v492
        %522 = vmatpush.msra.mxu0 %v491
        %523 = vmatpush.msra.mxu0 %v490
        %524 = vmatpush.msra.mxu0 %v489
        %525 = vmatpush.msra.mxu0 %v488
        %526 = vmatpush.msra.mxu0 %v487
        %527 = vmatpush.msra.mxu0 %v486
        %528 = vmatpush.msra.mxu0 %v485
        %529 = vmatpush.msra.mxu0 %v484
        %530 = vmatpush.msra.mxu0 %v483
        %531 = vmatmul.f32.gmra.mxu0 %v475
        %v532 = vpop.f32.mrf.mxu0
        %v533 = vadd.f32 0.0, %v532
        %534 = vmatmul.f32.gmra.mxu0 %v477
        %v535 = vpop.f32.mrf.mxu0
        %v536 = vadd.f32 0.0, %v535
        %537 = vmatmul.f32.gmra.mxu0 %v479
        %v538 = vpop.f32.mrf.mxu0
        %v539 = vadd.f32 0.0, %v538
        %540 = vmatmul.f32.gmra.mxu0 %v481
        %v541 = vpop.f32.mrf.mxu0
        %v542 = vadd.f32 0.0, %v541
        %543 = vdwg.mxu0
        %544 = vmatpush.msra.mxu0 %v514
        %545 = vmatpush.msra.mxu0 %v513
        %546 = vmatpush.msra.mxu0 %v512
        %547 = vmatpush.msra.mxu0 %v511
        %548 = vmatpush.msra.mxu0 %v510
        %549 = vmatpush.msra.mxu0 %v509
        %550 = vmatpush.msra.mxu0 %v508
        %551 = vmatpush.msra.mxu0 %v507
        %552 = vmatpush.msra.mxu0 %v506
        %553 = vmatpush.msra.mxu0 %v505
        %554 = vmatpush.msra.mxu0 %v504
        %555 = vmatpush.msra.mxu0 %v503
        %556 = vmatpush.msra.mxu0 %v502
        %557 = vmatpush.msra.mxu0 %v501
        %558 = vmatpush.msra.mxu0 %v500
        %559 = vmatpush.msra.mxu0 %v499
        %560 = vmatmul.f32.gmra.mxu0 %v476
        %v561 = vpop.f32.mrf.mxu0
        %v562 = vadd.f32 %v533, %v561
        %563 = vmatmul.f32.gmra.mxu0 %v478
        %v564 = vpop.f32.mrf.mxu0
        %v565 = vadd.f32 %v536, %v564
        %566 = vmatmul.f32.gmra.mxu0 %v480
        %v567 = vpop.f32.mrf.mxu0
        %v568 = vadd.f32 %v539, %v567
        %569 = vmatmul.f32.gmra.mxu0 %v482
        %v570 = vpop.f32.mrf.mxu0
        %v571 = vadd.f32 %v542, %v570
        %572 = vdwg.mxu0
        %v573 = vld [vmem:[%s304] sm:$0xff]
        %v574 = vld [vmem:[%s304 + $0x8] sm:$0xff]
        %v575 = vld [vmem:[%s304 + $0x10] sm:$0xff]
        %v576 = vld [vmem:[%s304 + $0x18] sm:$0xff]
        %v577 = vld [vmem:[%s304 + $0x20] sm:$0xff]
        %v578 = vld [vmem:[%s304 + $0x28] sm:$0xff]
        %v579 = vld [vmem:[%s304 + $0x30] sm:$0xff]
        %v580 = vld [vmem:[%s304 + $0x38] sm:$0xff]
        %v581 = vld [vmem:[%s304 + $0x40] sm:$0xff]
        %v582 = vld [vmem:[%s304 + $0x48] sm:$0xff]
        %v583 = vld [vmem:[%s304 + $0x50] sm:$0xff]
        %v584 = vld [vmem:[%s304 + $0x58] sm:$0xff]
        %v585 = vld [vmem:[%s304 + $0x60] sm:$0xff]
        %v586 = vld [vmem:[%s304 + $0x68] sm:$0xff]
        %v587 = vld [vmem:[%s304 + $0x70] sm:$0xff]
        %v588 = vld [vmem:[%s304 + $0x78] sm:$0xff]
        %v589 = vld [vmem:[%s304 + $0x80] sm:$0xff]
        %v590 = vld [vmem:[%s304 + $0x88] sm:$0xff]
        %v591 = vld [vmem:[%s304 + $0x90] sm:$0xff]
        %v592 = vld [vmem:[%s304 + $0x98] sm:$0xff]
        %v593 = vld [vmem:[%s304 + $0xa0] sm:$0xff]
        %v594 = vld [vmem:[%s304 + $0xa8] sm:$0xff]
        %v595 = vld [vmem:[%s304 + $0xb0] sm:$0xff]
        %v596 = vld [vmem:[%s304 + $0xb8] sm:$0xff]
        %v597 = vld [vmem:[%s304 + $0xc0] sm:$0xff]
        %v598 = vld [vmem:[%s304 + $0xc8] sm:$0xff]
        %v599 = vld [vmem:[%s304 + $0xd0] sm:$0xff]
        %v600 = vld [vmem:[%s304 + $0xd8] sm:$0xff]
        %v601 = vld [vmem:[%s304 + $0xe0] sm:$0xff]
        %v602 = vld [vmem:[%s304 + $0xe8] sm:$0xff]
        %v603 = vld [vmem:[%s304 + $0xf0] sm:$0xff]
        %v604 = vld [vmem:[%s304 + $0xf8] sm:$0xff]
        %v605 = vmul.f32 %v573, %v562
        %v606 = vmul.f32 %v574, %v565
        %v607 = vmul.f32 %v575, %v568
        %v608 = vmul.f32 %v576, %v571
        %v609 = vmul.f32 %v577, %v562
        %v610 = vmul.f32 %v578, %v565
        %v611 = vmul.f32 %v579, %v568
        %v612 = vmul.f32 %v580, %v571
        %v613 = vmul.f32 %v581, %v562
        %v614 = vmul.f32 %v582, %v565
        %v615 = vmul.f32 %v583, %v568
        %v616 = vmul.f32 %v584, %v571
        %v617 = vmul.f32 %v585, %v562
        %v618 = vmul.f32 %v586, %v565
        %v619 = vmul.f32 %v587, %v568
        %v620 = vmul.f32 %v588, %v571
        %v621 = vmul.f32 %v589, %v562
        %v622 = vmul.f32 %v590, %v565
        %v623 = vmul.f32 %v591, %v568
        %v624 = vmul.f32 %v592, %v571
        %v625 = vmul.f32 %v593, %v562
        %v626 = vmul.f32 %v594, %v565
        %v627 = vmul.f32 %v595, %v568
        %v628 = vmul.f32 %v596, %v571
        %v629 = vmul.f32 %v597, %v562
        %v630 = vmul.f32 %v598, %v565
        %v631 = vmul.f32 %v599, %v568
        %v632 = vmul.f32 %v600, %v571
        %v633 = vmul.f32 %v601, %v562
        %v634 = vmul.f32 %v602, %v565
        %v635 = vmul.f32 %v603, %v568
        %v636 = vmul.f32 %v604, %v571
        %vm637 = vcmask 261120
        %638 = vst.msk [vmem:[%s342] sm:$0xff] %vm637, %v605
        %639 = vst.msk [vmem:[%s342 + $0x8] sm:$0xff] %vm637, %v606
        %640 = vst.msk [vmem:[%s342 + $0x10] sm:$0xff] %vm637, %v607
        %641 = vst.msk [vmem:[%s342 + $0x18] sm:$0xff] %vm637, %v608
        %642 = vst.msk [vmem:[%s342 + $0x20] sm:$0xff] %vm637, %v609
        %643 = vst.msk [vmem:[%s342 + $0x28] sm:$0xff] %vm637, %v610
        %644 = vst.msk [vmem:[%s342 + $0x30] sm:$0xff] %vm637, %v611
        %645 = vst.msk [vmem:[%s342 + $0x38] sm:$0xff] %vm637, %v612
        %646 = vst.msk [vmem:[%s342 + $0x40] sm:$0xff] %vm637, %v613
        %647 = vst.msk [vmem:[%s342 + $0x48] sm:$0xff] %vm637, %v614
        %648 = vst.msk [vmem:[%s342 + $0x50] sm:$0xff] %vm637, %v615
        %649 = vst.msk [vmem:[%s342 + $0x58] sm:$0xff] %vm637, %v616
        %650 = vst.msk [vmem:[%s342 + $0x60] sm:$0xff] %vm637, %v617
        %651 = vst.msk [vmem:[%s342 + $0x68] sm:$0xff] %vm637, %v618
        %652 = vst.msk [vmem:[%s342 + $0x70] sm:$0xff] %vm637, %v619
        %653 = vst.msk [vmem:[%s342 + $0x78] sm:$0xff] %vm637, %v620
        %654 = vst.msk [vmem:[%s342 + $0x80] sm:$0xff] %vm637, %v621
        %655 = vst.msk [vmem:[%s342 + $0x88] sm:$0xff] %vm637, %v622
        %656 = vst.msk [vmem:[%s342 + $0x90] sm:$0xff] %vm637, %v623
        %657 = vst.msk [vmem:[%s342 + $0x98] sm:$0xff] %vm637, %v624
        %658 = vst.msk [vmem:[%s342 + $0xa0] sm:$0xff] %vm637, %v625
        %659 = vst.msk [vmem:[%s342 + $0xa8] sm:$0xff] %vm637, %v626
        %660 = vst.msk [vmem:[%s342 + $0xb0] sm:$0xff] %vm637, %v627
        %661 = vst.msk [vmem:[%s342 + $0xb8] sm:$0xff] %vm637, %v628
        %662 = vst.msk [vmem:[%s342 + $0xc0] sm:$0xff] %vm637, %v629
        %663 = vst.msk [vmem:[%s342 + $0xc8] sm:$0xff] %vm637, %v630
        %664 = vst.msk [vmem:[%s342 + $0xd0] sm:$0xff] %vm637, %v631
        %665 = vst.msk [vmem:[%s342 + $0xd8] sm:$0xff] %vm637, %v632
        %666 = vst.msk [vmem:[%s342 + $0xe0] sm:$0xff] %vm637, %v633
        %667 = vst.msk [vmem:[%s342 + $0xe8] sm:$0xff] %vm637, %v634
        %668 = vst.msk [vmem:[%s342 + $0xf0] sm:$0xff] %vm637, %v635
        %669 = vst.msk [vmem:[%s342 + $0xf8] sm:$0xff] %vm637, %v636
        %s670 = sand.u32 %s213, 1
        %s671 = scalar_lea.sflag [#allocation5], %s670
        %s672 = sand.u32 %s213, 1
        %s673 = smul.addr %s672, 256
        %s674 = scalar_lea.vmem [#allocation6], %s673
        // Predicated region
        $region57: #{tpu_custom_call.1} parent=51 // pred_check
          %p675 = pneg %p223
        $region58: #{tpu_custom_call.1} parent=51 // pred_check_branch
          %677 = sbr.rel (%p675) target = $region60
        $region59: #{tpu_custom_call.1} parent=51 // pred_region
          %679 = vsyncadd %s671, 0
          %s680 = smul.addr %s27, 32
          %s681 = smul.addr %s680, 8
          %s682 = scalar_lea.hbm %s8, %s681
          %s683 = sshll.u32 %s674, 4
          %s684 = int_to_ptr.vmem [resolvable:$true] %s683
          %s685 = sshll.u32 %s682, 4
          %s686 = int_to_ptr.hbm [resolvable:$true] %s685
          %691 = dma.vmem_to_hbm [thread:$0]  %s684, 4096, %s686, %s671, 128, 128, 8
        $region60: #{tpu_custom_call.1} parent=51 // pred_fallthru
          _
      $region52: #{tpu_custom_call.1} parent=5 // pred_fallthru
        _
      %p692 = scmp.le.s32.totalorder 2, %s22
      // Predicated region
      $region61: #{tpu_custom_call.1} parent=5 // pred_check
        %p693 = pneg %p692
      $region62: #{tpu_custom_call.1} parent=5 // pred_check_branch
        %695 = sbr.rel (%p693) target = $region64
      $region63: #{tpu_custom_call.1} parent=5 // pred_region
        %s696 = ssub.s32 %s22, 2
        // Predicated region
        $region65: #{tpu_custom_call.1} parent=63 // pred_check
          %p697 = pneg %p229
        $region66: #{tpu_custom_call.1} parent=63 // pred_check_branch
          %699 = sbr.rel (%p697) target = $region68
        $region67: #{tpu_custom_call.1} parent=63 // pred_region
          %s700 = sand.u32 %s214, 1
          %s701 = scalar_lea.sflag [#allocation5], %s700
          %s702 = sand.u32 %s214, 1
          %s703 = smul.addr %s702, 256
          %s704 = scalar_lea.vmem [#allocation6], %s703
          %706 = dma.done %s701, 4096
        $region68: #{tpu_custom_call.1} parent=63 // pred_fallthru
          _
      $region64: #{tpu_custom_call.1} parent=5 // pred_fallthru
        _
    $region6: #{tpu_custom_call.1} parent=1 // loop_footer
      %s26 = sadd.s32 1, %s22
    $region7: #{tpu_custom_call.1} parent=1 // loop_footer_branch
      %21 = sbr.rel target = $region3
    $region8: #{tpu_custom_call.1} parent=1 // loop_exit
      _
    %707 = vsyncpa [#allocation4], 1
    %s708 = scalar_lea.sflag [#allocation4], 1
    %709 = vsyncpa %s708, 1
    %710 = vsyncpa [#allocation5], 1
    %s711 = scalar_lea.sflag [#allocation5], 1
    %712 = vsyncpa %s711, 1

</llo_original>
